<compile_context>
chip_gen: v7x
topology: tpu7x:2x2x1
jax: 0.10.0
libtpu: 0.0.40
codegen_flags: <defaults>
</compile_context>

<pallas_src>
import functools
import math

import numpy as np
import jax
import jax.numpy as jnp
from jax import lax
from jax.experimental import pallas as pl
from jax.experimental.pallas import tpu as pltpu


def _taps():
    # (dy, dx, p, q): dy/dx are source-pixel offsets along H/W; (p, q) index the
    # 3x3 conv coefficient w[p][q] exactly as the torch code applies it after
    # its transpose(1, 3) round-trip (verified against _ref_update below).
    return [(q - 1, p - 1, p, q) for p in range(3) for q in range(3)]


def _sobel_kernels(angle):
    """w1, w2 as nested Python-float 3x3 lists (same formula as the module)."""
    c = math.cos(angle * math.pi / 180.0)
    s = math.sin(angle * math.pi / 180.0)
    dxk = [[o * i / 8.0 for i in (-1.0, 0.0, 1.0)] for o in (1.0, 2.0, 1.0)]
    dyk = [[dxk[q][p] for q in range(3)] for p in range(3)]
    w1k = [[c * dxk[p][q] - s * dyk[p][q] for q in range(3)] for p in range(3)]
    w2k = [[s * dxk[p][q] + c * dyk[p][q] for q in range(3)] for p in range(3)]
    return w1k, w2k


def _fold_fc0(w0, w1k, w2k):
    """Fold [identity, conv(w1), conv(w2)] + fc0 into one (HID, 9*C) weight."""
    hid, three_c = w0.shape
    C = three_c // 3
    blocks = []
    for dy, dx, p, q in _taps():
        cid = 1.0 if (dy == 0 and dx == 0) else 0.0
        blocks.append(cid * w0[:, :C]
                      + w1k[p][q] * w0[:, C:2 * C]
                      + w2k[p][q] * w0[:, 2 * C:3 * C])
    return jnp.concatenate(blocks, axis=1)


def _tap_masks(B, H, W):
    """(9, B*H*W) f32 validity masks (zero conv padding / pool boundary)."""
    S = H * W
    k = np.arange(S)
    i, j = k // W, k % W
    rows = []
    for dy, dx, _, _ in _taps():
        valid = ((i + dy >= 0) & (i + dy < H) & (j + dx >= 0) & (j + dx < W))
        rows.append(np.tile(valid.astype(np.float32), B))
    return jnp.asarray(np.stack(rows, axis=0))


def _ca_rollout_kernel(H, W, taps, steps,
                       x_ref, keeps_ref, mask_ref, wf_ref, b0_ref, w1_ref,
                       o_ref):
    """Whole rollout: `steps` update() iterations inside one kernel.

    x_ref:     (C, B*S)         initial state (channels-first, spatial flat)
    keeps_ref: (steps, 1, B*S)  per-step stochastic fire masks (float 0/1)
    mask_ref:  (9, B*S)         per-tap boundary validity masks
    wf_ref:    (HID, 9*C)       folded perceive+fc0 weight
    b0_ref:    (HID, 1)         fc0 bias
    w1_ref:    (C, HID)         fc1 weight
    o_ref:     (C, B*S)         final state
    """
    # Loop-invariant loads hoisted out of the rollout loop.
    masks = mask_ref[...]                        # (9, BS)
    wf = wf_ref[...]                             # (HID, 9C)
    b0 = b0_ref[...]                             # (HID, 1)
    w1 = w1_ref[...]                             # (C, HID)

    def tap_slab(v, t, dy, dx):
        off = dy * W + dx
        r = v if off == 0 else jnp.roll(v, -off, axis=-1)
        if dy == 0 and dx == 0:
            return r                             # center tap: always valid
        return r * masks[t:t + 1, :]             # zero out wrapped/OOB lanes

    def step_fn(step, x):
        keep = keeps_ref[step]                   # (1, BS) this step's fire mask

        # im2col: 9 zero-padded shifted copies of the state (lane-axis rolls).
        slabs = [tap_slab(x, t, dy, dx)
                 for t, (dy, dx, _, _) in enumerate(taps)]
        x9 = jnp.concatenate(slabs, axis=0)      # (9*C, BS)

        # perceive + fc0 (folded, single MXU matmul) -> ReLU -> fc1.
        h = jnp.dot(wf, x9, preferred_element_type=jnp.float32)
        h = jnp.maximum(h + b0, 0.0)             # (HID, BS)
        delta = jnp.dot(w1, h, preferred_element_type=jnp.float32)

        # Stochastic fire mask + residual update.
        x_new = x + delta * keep                 # (C, BS)

        # Pre-update alive mask: 3x3 max-pool of channel 3, reusing the im2col
        # slabs (zero padding == -inf padding since the 0.1 threshold > 0).
        pre_max = slabs[0][3:4, :]
        for slab in slabs[1:]:
            pre_max = jnp.maximum(pre_max, slab[3:4, :])

        # Post-update alive mask: same pool on the updated channel 3 only.
        a_new = x_new[3:4, :]
        post_max = None
        for t, (dy, dx, _, _) in enumerate(taps):
            r = tap_slab(a_new, t, dy, dx)
            post_max = r if post_max is None else jnp.maximum(post_max, r)

        life = jnp.logical_and(pre_max > 0.1,
                               post_max > 0.1).astype(jnp.float32)
        return x_new * life

    o_ref[...] = lax.fori_loop(0, steps, step_fn, x_ref[...])


@functools.partial(jax.jit, static_argnames=("angle",))
def ca_forward(x, keeps, w0, b0, w1, angle=0.0):
    """CAModel.forward(): `steps = keeps.shape[0]` update() steps, one kernel.

    x: (B, H, W, C) f32.  keeps: (steps, B, H, W, 1) float 0/1 fire masks.
    w0: (HID, 3C), b0: (HID,), w1: (C, HID).
    """
    B, H, W, C = x.shape
    steps = keeps.shape[0]
    HID = w0.shape[0]
    assert C >= 4, "alive() reads channel 3, so channel_n >= 4 is required"
    BS = B * H * W

    w1k, w2k = _sobel_kernels(angle)
    wf = _fold_fc0(w0, w1k, w2k)                 # (HID, 9C)
    masks = _tap_masks(B, H, W)                  # (9, BS)

    # Lane-dense layout: channels-first, batch+spatial flattened onto lanes.
    x_cf = jnp.transpose(x, (3, 0, 1, 2)).reshape(C, BS)
    keeps_cf = keeps.reshape(steps, 1, BS)

    kernel = functools.partial(_ca_rollout_kernel, H, W, _taps(), steps)
    out_cf = pl.pallas_call(
        kernel,
        out_shape=jax.ShapeDtypeStruct((C, BS), jnp.float32),
        in_specs=[pl.BlockSpec(memory_space=pltpu.MemorySpace.VMEM)
                  for _ in range(6)],
        out_specs=pl.BlockSpec(memory_space=pltpu.MemorySpace.VMEM),
    )(x_cf, keeps_cf, masks, wf, b0.reshape(HID, 1), w1)

    return out_cf.reshape(C, B, H, W).transpose(1, 2, 3, 0)


# ---------------------------------------------------------------------------
# Pure-JAX reference that literally mirrors the PyTorch code (NCHW transposes,
# depthwise conv2d, -inf-padded max_pool2d) for correctness checking.
# ---------------------------------------------------------------------------
def _ref_update(x, keep, w0, b0, w1, angle=0.0):
    B, H, W, C = x.shape
    xt = jnp.transpose(x, (0, 3, 2, 1))                      # transpose(1,3)

    def maxpool3(ch):                                        # [B,1,h,w]
        return lax.reduce_window(ch, -jnp.inf, lax.max, (1, 1, 3, 3),
                                 (1, 1, 1, 1),
                                 [(0, 0), (0, 0), (1, 1), (1, 1)])

    def dwconv(inp, k33):
        w = jnp.tile(jnp.asarray(k33, jnp.float32).reshape(1, 1, 3, 3),
                     (C, 1, 1, 1))
        return lax.conv_general_dilated(
            inp, w, (1, 1), [(1, 1), (1, 1)],
            dimension_numbers=("NCHW", "OIHW", "NCHW"),
            feature_group_count=C)

    pre_alive = maxpool3(xt[:, 3:4]) > 0.1
    w1k, w2k = _sobel_kernels(angle)
    y = jnp.concatenate([xt, dwconv(xt, w1k), dwconv(xt, w2k)], axis=1)
    yb = jnp.transpose(y, (0, 3, 2, 1))
    d = jnp.maximum(yb @ w0.T + b0, 0.0) @ w1.T
    d = d * keep
    xt = xt + jnp.transpose(d, (0, 3, 2, 1))
    post_alive = maxpool3(xt[:, 3:4]) > 0.1
    life = jnp.logical_and(pre_alive, post_alive).astype(jnp.float32)
    return jnp.transpose(xt * life, (0, 3, 2, 1))


if __name__ == "__main__":
    B, H, W, C, HID = 2, 16, 16, 4, 32          # channel_n=4, hidden_size=32
    FIRE_RATE = 0.5
    STEPS = 2
    ANGLE = 0.0

    key = jax.random.PRNGKey(0)
    k0, k1, k2, kx, kfire = jax.random.split(key, 5)

    # fc0 = Linear(3C, HID), fc1 = Linear(HID, C, bias=False).  NOTE: the
    # module's __init__ zeros fc1.weight; small random values are used instead
    # so the FC path is actually exercised.
    w0 = 0.1 * jax.random.normal(k0, (HID, 3 * C), jnp.float32)
    b0 = 0.1 * jax.random.normal(k1, (HID,), jnp.float32)
    w1 = 0.1 * jax.random.normal(k2, (C, HID), jnp.float32)

    x = jax.random.uniform(kx, (B, H, W, C), jnp.float32)

    # Stochastic fire masks (torch.rand > fire_rate), one per step.
    # TODO(synk): bit-exact reproduction of torch's RNG stream is not possible;
    # the Bernoulli keep-mask semantics are reproduced with jax.random (they
    # could also be generated in-kernel via pltpu.prng_random_bits).
    keep_list = []
    for _ in range(STEPS):
        kfire, sub = jax.random.split(kfire)
        keep_list.append((jax.random.uniform(sub, (B, H, W, 1)) >
                          FIRE_RATE).astype(jnp.float32))
    keeps = jnp.stack(keep_list, axis=0)         # (STEPS, B, H, W, 1)

    out = jax.block_until_ready(ca_forward(x, keeps, w0, b0, w1, angle=ANGLE))

    # Correctness check against the literal (transpose/conv2d/maxpool) path.
    ref = x
    for t in range(STEPS):
        ref = _ref_update(ref, keep_list[t], w0, b0, w1, angle=ANGLE)
    ref = jax.block_until_ready(ref)

    assert out.shape == (B, H, W, C) and out.dtype == jnp.float32
    max_err = float(jnp.max(jnp.abs(out - ref)))
    assert max_err < 1e-4, f"mismatch vs reference, max abs err = {max_err}"

    print("KERNEL_OK")
</pallas_src>

<mosaic_0001>
module attributes {stable_mosaic.version = 11 : i64} {
  func.func @_ca_rollout_kernel(%arg0: memref<4x512xf32, #tpu.memory_space<vmem>>, %arg1: memref<2x1x512xf32, #tpu.memory_space<vmem>>, %arg2: memref<9x512xf32, #tpu.memory_space<vmem>>, %arg3: memref<32x36xf32, #tpu.memory_space<vmem>>, %arg4: memref<32x1xf32, #tpu.memory_space<vmem>>, %arg5: memref<4x32xf32, #tpu.memory_space<vmem>>, %arg6: memref<4x512xf32, #tpu.memory_space<vmem>>) attributes {dimension_semantics = [], scalar_prefetch = 0 : i64, scratch_operands = 0 : i64, tpu.core_type = #tpu.core_type<tc>} {
    %c0 = arith.constant 0 : index
    %c0_0 = arith.constant 0 : index
    %0 = vector.load %arg2[%c0, %c0_0] : memref<9x512xf32, #tpu.memory_space<vmem>>, vector<9x512xf32>
    %c0_1 = arith.constant 0 : index
    %c0_2 = arith.constant 0 : index
    %1 = vector.load %arg3[%c0_1, %c0_2] : memref<32x36xf32, #tpu.memory_space<vmem>>, vector<32x36xf32>
    %c0_3 = arith.constant 0 : index
    %c0_4 = arith.constant 0 : index
    %2 = vector.load %arg4[%c0_3, %c0_4] : memref<32x1xf32, #tpu.memory_space<vmem>>, vector<32x1xf32>
    %c0_5 = arith.constant 0 : index
    %c0_6 = arith.constant 0 : index
    %3 = vector.load %arg5[%c0_5, %c0_6] : memref<4x32xf32, #tpu.memory_space<vmem>>, vector<4x32xf32>
    %c0_7 = arith.constant 0 : index
    %c0_8 = arith.constant 0 : index
    %4 = vector.load %arg0[%c0_7, %c0_8] : memref<4x512xf32, #tpu.memory_space<vmem>>, vector<4x512xf32>
    %c0_i32 = arith.constant 0 : i32
    %c2_i32 = arith.constant 2 : i32
    %5 = arith.addi %c0_i32, %c2_i32 : i32
    %c1_i32 = arith.constant 1 : i32
    %6 = scf.for %arg7 = %c0_i32 to %5 step %c1_i32 iter_args(%arg8 = %4) -> (vector<4x512xf32>)  : i32 {
      %8 = arith.index_cast %arg7 : i32 to index
      %c0_12 = arith.constant 0 : index
      %c0_13 = arith.constant 0 : index
      %9 = vector.load %arg1[%8, %c0_12, %c0_13] : memref<2x1x512xf32, #tpu.memory_space<vmem>>, vector<1x1x512xf32>
      %10 = vector.shape_cast %9 : vector<1x1x512xf32> to vector<1x512xf32>
      %11 = vector.extract_strided_slice %arg8 {offsets = [0, 495], sizes = [4, 17], strides = [1, 1]} : vector<4x512xf32> to vector<4x17xf32>
      %12 = vector.extract_strided_slice %arg8 {offsets = [0, 0], sizes = [4, 495], strides = [1, 1]} : vector<4x512xf32> to vector<4x495xf32>
      %13 = tpu.concatenate %11, %12 in 1 : vector<4x17xf32>, vector<4x495xf32> -> vector<4x512xf32>
      %14 = vector.extract_strided_slice %0 {offsets = [0, 0], sizes = [1, 512], strides = [1, 1]} : vector<9x512xf32> to vector<1x512xf32>
      %15 = vector.broadcast %14 : vector<1x512xf32> to vector<4x512xf32>
      %16 = arith.mulf %13, %15 : vector<4x512xf32>
      %17 = vector.extract_strided_slice %arg8 {offsets = [0, 511], sizes = [4, 1], strides = [1, 1]} : vector<4x512xf32> to vector<4x1xf32>
      %18 = vector.extract_strided_slice %arg8 {offsets = [0, 0], sizes = [4, 511], strides = [1, 1]} : vector<4x512xf32> to vector<4x511xf32>
      %19 = tpu.concatenate %17, %18 in 1 : vector<4x1xf32>, vector<4x511xf32> -> vector<4x512xf32>
      %20 = vector.extract_strided_slice %0 {offsets = [1, 0], sizes = [1, 512], strides = [1, 1]} : vector<9x512xf32> to vector<1x512xf32>
      %21 = vector.broadcast %20 : vector<1x512xf32> to vector<4x512xf32>
      %22 = arith.mulf %19, %21 : vector<4x512xf32>
      %23 = vector.extract_strided_slice %arg8 {offsets = [0, 15], sizes = [4, 497], strides = [1, 1]} : vector<4x512xf32> to vector<4x497xf32>
      %24 = vector.extract_strided_slice %arg8 {offsets = [0, 0], sizes = [4, 15], strides = [1, 1]} : vector<4x512xf32> to vector<4x15xf32>
      %25 = tpu.concatenate %23, %24 in 1 : vector<4x497xf32>, vector<4x15xf32> -> vector<4x512xf32>
      %26 = vector.extract_strided_slice %0 {offsets = [2, 0], sizes = [1, 512], strides = [1, 1]} : vector<9x512xf32> to vector<1x512xf32>
      %27 = vector.broadcast %26 : vector<1x512xf32> to vector<4x512xf32>
      %28 = arith.mulf %25, %27 : vector<4x512xf32>
      %29 = vector.extract_strided_slice %arg8 {offsets = [0, 496], sizes = [4, 16], strides = [1, 1]} : vector<4x512xf32> to vector<4x16xf32>
      %30 = vector.extract_strided_slice %arg8 {offsets = [0, 0], sizes = [4, 496], strides = [1, 1]} : vector<4x512xf32> to vector<4x496xf32>
      %31 = tpu.concatenate %29, %30 in 1 : vector<4x16xf32>, vector<4x496xf32> -> vector<4x512xf32>
      %32 = vector.extract_strided_slice %0 {offsets = [3, 0], sizes = [1, 512], strides = [1, 1]} : vector<9x512xf32> to vector<1x512xf32>
      %33 = vector.broadcast %32 : vector<1x512xf32> to vector<4x512xf32>
      %34 = arith.mulf %31, %33 : vector<4x512xf32>
      %35 = vector.extract_strided_slice %arg8 {offsets = [0, 16], sizes = [4, 496], strides = [1, 1]} : vector<4x512xf32> to vector<4x496xf32>
      %36 = vector.extract_strided_slice %arg8 {offsets = [0, 0], sizes = [4, 16], strides = [1, 1]} : vector<4x512xf32> to vector<4x16xf32>
      %37 = tpu.concatenate %35, %36 in 1 : vector<4x496xf32>, vector<4x16xf32> -> vector<4x512xf32>
      %38 = vector.extract_strided_slice %0 {offsets = [5, 0], sizes = [1, 512], strides = [1, 1]} : vector<9x512xf32> to vector<1x512xf32>
      %39 = vector.broadcast %38 : vector<1x512xf32> to vector<4x512xf32>
      %40 = arith.mulf %37, %39 : vector<4x512xf32>
      %41 = vector.extract_strided_slice %arg8 {offsets = [0, 497], sizes = [4, 15], strides = [1, 1]} : vector<4x512xf32> to vector<4x15xf32>
      %42 = vector.extract_strided_slice %arg8 {offsets = [0, 0], sizes = [4, 497], strides = [1, 1]} : vector<4x512xf32> to vector<4x497xf32>
      %43 = tpu.concatenate %41, %42 in 1 : vector<4x15xf32>, vector<4x497xf32> -> vector<4x512xf32>
      %44 = vector.extract_strided_slice %0 {offsets = [6, 0], sizes = [1, 512], strides = [1, 1]} : vector<9x512xf32> to vector<1x512xf32>
      %45 = vector.broadcast %44 : vector<1x512xf32> to vector<4x512xf32>
      %46 = arith.mulf %43, %45 : vector<4x512xf32>
      %47 = vector.extract_strided_slice %arg8 {offsets = [0, 1], sizes = [4, 511], strides = [1, 1]} : vector<4x512xf32> to vector<4x511xf32>
      %48 = vector.extract_strided_slice %arg8 {offsets = [0, 0], sizes = [4, 1], strides = [1, 1]} : vector<4x512xf32> to vector<4x1xf32>
      %49 = tpu.concatenate %47, %48 in 1 : vector<4x511xf32>, vector<4x1xf32> -> vector<4x512xf32>
      %50 = vector.extract_strided_slice %0 {offsets = [7, 0], sizes = [1, 512], strides = [1, 1]} : vector<9x512xf32> to vector<1x512xf32>
      %51 = vector.broadcast %50 : vector<1x512xf32> to vector<4x512xf32>
      %52 = arith.mulf %49, %51 : vector<4x512xf32>
      %53 = vector.extract_strided_slice %arg8 {offsets = [0, 17], sizes = [4, 495], strides = [1, 1]} : vector<4x512xf32> to vector<4x495xf32>
      %54 = vector.extract_strided_slice %arg8 {offsets = [0, 0], sizes = [4, 17], strides = [1, 1]} : vector<4x512xf32> to vector<4x17xf32>
      %55 = tpu.concatenate %53, %54 in 1 : vector<4x495xf32>, vector<4x17xf32> -> vector<4x512xf32>
      %56 = vector.extract_strided_slice %0 {offsets = [8, 0], sizes = [1, 512], strides = [1, 1]} : vector<9x512xf32> to vector<1x512xf32>
      %57 = vector.broadcast %56 : vector<1x512xf32> to vector<4x512xf32>
      %58 = arith.mulf %55, %57 : vector<4x512xf32>
      %59 = tpu.concatenate %16, %22, %28, %34, %arg8, %40, %46, %52, %58 in 0 : vector<4x512xf32>, vector<4x512xf32>, vector<4x512xf32>, vector<4x512xf32>, vector<4x512xf32>, vector<4x512xf32>, vector<4x512xf32>, vector<4x512xf32>, vector<4x512xf32> -> vector<36x512xf32>
      %cst = arith.constant dense<0.000000e+00> : vector<32x512xf32>
      %60 = tpu.matmul %1, %59, %cst {dimension_numbers = #tpu.dot_dimension_numbers<[1], [0], [0], [1], [0, 0, 1, 1], [], []>} : vector<32x36xf32>, vector<36x512xf32>, vector<32x512xf32> -> vector<32x512xf32>
      %61 = vector.broadcast %2 : vector<32x1xf32> to vector<32x512xf32>
      %62 = arith.addf %60, %61 : vector<32x512xf32>
      %cst_14 = arith.constant 0.000000e+00 : f32
      %63 = vector.broadcast %cst_14 : f32 to vector<32x512xf32>
      %64 = arith.maximumf %62, %63 : vector<32x512xf32>
      %cst_15 = arith.constant dense<0.000000e+00> : vector<4x512xf32>
      %65 = tpu.matmul %3, %64, %cst_15 {dimension_numbers = #tpu.dot_dimension_numbers<[1], [0], [0], [1], [0, 0, 1, 1], [], []>} : vector<4x32xf32>, vector<32x512xf32>, vector<4x512xf32> -> vector<4x512xf32>
      %66 = vector.broadcast %10 : vector<1x512xf32> to vector<4x512xf32>
      %67 = arith.mulf %65, %66 : vector<4x512xf32>
      %68 = arith.addf %arg8, %67 : vector<4x512xf32>
      %69 = vector.extract_strided_slice %16 {offsets = [3, 0], sizes = [1, 512], strides = [1, 1]} : vector<4x512xf32> to vector<1x512xf32>
      %70 = vector.extract_strided_slice %22 {offsets = [3, 0], sizes = [1, 512], strides = [1, 1]} : vector<4x512xf32> to vector<1x512xf32>
      %71 = arith.maximumf %69, %70 : vector<1x512xf32>
      %72 = vector.extract_strided_slice %28 {offsets = [3, 0], sizes = [1, 512], strides = [1, 1]} : vector<4x512xf32> to vector<1x512xf32>
      %73 = arith.maximumf %71, %72 : vector<1x512xf32>
      %74 = vector.extract_strided_slice %34 {offsets = [3, 0], sizes = [1, 512], strides = [1, 1]} : vector<4x512xf32> to vector<1x512xf32>
      %75 = arith.maximumf %73, %74 : vector<1x512xf32>
      %76 = vector.extract_strided_slice %arg8 {offsets = [3, 0], sizes = [1, 512], strides = [1, 1]} : vector<4x512xf32> to vector<1x512xf32>
      %77 = arith.maximumf %75, %76 : vector<1x512xf32>
      %78 = vector.extract_strided_slice %40 {offsets = [3, 0], sizes = [1, 512], strides = [1, 1]} : vector<4x512xf32> to vector<1x512xf32>
      %79 = arith.maximumf %77, %78 : vector<1x512xf32>
      %80 = vector.extract_strided_slice %46 {offsets = [3, 0], sizes = [1, 512], strides = [1, 1]} : vector<4x512xf32> to vector<1x512xf32>
      %81 = arith.maximumf %79, %80 : vector<1x512xf32>
      %82 = vector.extract_strided_slice %52 {offsets = [3, 0], sizes = [1, 512], strides = [1, 1]} : vector<4x512xf32> to vector<1x512xf32>
      %83 = arith.maximumf %81, %82 : vector<1x512xf32>
      %84 = vector.extract_strided_slice %58 {offsets = [3, 0], sizes = [1, 512], strides = [1, 1]} : vector<4x512xf32> to vector<1x512xf32>
      %85 = arith.maximumf %83, %84 : vector<1x512xf32>
      %86 = vector.extract_strided_slice %68 {offsets = [3, 0], sizes = [1, 512], strides = [1, 1]} : vector<4x512xf32> to vector<1x512xf32>
      %87 = vector.extract_strided_slice %86 {offsets = [0, 495], sizes = [1, 17], strides = [1, 1]} : vector<1x512xf32> to vector<1x17xf32>
      %88 = vector.extract_strided_slice %86 {offsets = [0, 0], sizes = [1, 495], strides = [1, 1]} : vector<1x512xf32> to vector<1x495xf32>
      %89 = tpu.concatenate %87, %88 in 1 : vector<1x17xf32>, vector<1x495xf32> -> vector<1x512xf32>
      %90 = vector.extract_strided_slice %0 {offsets = [0, 0], sizes = [1, 512], strides = [1, 1]} : vector<9x512xf32> to vector<1x512xf32>
      %91 = arith.mulf %89, %90 : vector<1x512xf32>
      %92 = vector.extract_strided_slice %86 {offsets = [0, 511], sizes = [1, 1], strides = [1, 1]} : vector<1x512xf32> to vector<1x1xf32>
      %93 = vector.extract_strided_slice %86 {offsets = [0, 0], sizes = [1, 511], strides = [1, 1]} : vector<1x512xf32> to vector<1x511xf32>
      %94 = tpu.concatenate %92, %93 in 1 : vector<1x1xf32>, vector<1x511xf32> -> vector<1x512xf32>
      %95 = vector.extract_strided_slice %0 {offsets = [1, 0], sizes = [1, 512], strides = [1, 1]} : vector<9x512xf32> to vector<1x512xf32>
      %96 = arith.mulf %94, %95 : vector<1x512xf32>
      %97 = arith.maximumf %91, %96 : vector<1x512xf32>
      %98 = vector.extract_strided_slice %86 {offsets = [0, 15], sizes = [1, 497], strides = [1, 1]} : vector<1x512xf32> to vector<1x497xf32>
      %99 = vector.extract_strided_slice %86 {offsets = [0, 0], sizes = [1, 15], strides = [1, 1]} : vector<1x512xf32> to vector<1x15xf32>
      %100 = tpu.concatenate %98, %99 in 1 : vector<1x497xf32>, vector<1x15xf32> -> vector<1x512xf32>
      %101 = vector.extract_strided_slice %0 {offsets = [2, 0], sizes = [1, 512], strides = [1, 1]} : vector<9x512xf32> to vector<1x512xf32>
      %102 = arith.mulf %100, %101 : vector<1x512xf32>
      %103 = arith.maximumf %97, %102 : vector<1x512xf32>
      %104 = vector.extract_strided_slice %86 {offsets = [0, 496], sizes = [1, 16], strides = [1, 1]} : vector<1x512xf32> to vector<1x16xf32>
      %105 = vector.extract_strided_slice %86 {offsets = [0, 0], sizes = [1, 496], strides = [1, 1]} : vector<1x512xf32> to vector<1x496xf32>
      %106 = tpu.concatenate %104, %105 in 1 : vector<1x16xf32>, vector<1x496xf32> -> vector<1x512xf32>
      %107 = vector.extract_strided_slice %0 {offsets = [3, 0], sizes = [1, 512], strides = [1, 1]} : vector<9x512xf32> to vector<1x512xf32>
      %108 = arith.mulf %106, %107 : vector<1x512xf32>
      %109 = arith.maximumf %103, %108 : vector<1x512xf32>
      %110 = arith.maximumf %109, %86 : vector<1x512xf32>
      %111 = vector.extract_strided_slice %86 {offsets = [0, 16], sizes = [1, 496], strides = [1, 1]} : vector<1x512xf32> to vector<1x496xf32>
      %112 = vector.extract_strided_slice %86 {offsets = [0, 0], sizes = [1, 16], strides = [1, 1]} : vector<1x512xf32> to vector<1x16xf32>
      %113 = tpu.concatenate %111, %112 in 1 : vector<1x496xf32>, vector<1x16xf32> -> vector<1x512xf32>
      %114 = vector.extract_strided_slice %0 {offsets = [5, 0], sizes = [1, 512], strides = [1, 1]} : vector<9x512xf32> to vector<1x512xf32>
      %115 = arith.mulf %113, %114 : vector<1x512xf32>
      %116 = arith.maximumf %110, %115 : vector<1x512xf32>
      %117 = vector.extract_strided_slice %86 {offsets = [0, 497], sizes = [1, 15], strides = [1, 1]} : vector<1x512xf32> to vector<1x15xf32>
      %118 = vector.extract_strided_slice %86 {offsets = [0, 0], sizes = [1, 497], strides = [1, 1]} : vector<1x512xf32> to vector<1x497xf32>
      %119 = tpu.concatenate %117, %118 in 1 : vector<1x15xf32>, vector<1x497xf32> -> vector<1x512xf32>
      %120 = vector.extract_strided_slice %0 {offsets = [6, 0], sizes = [1, 512], strides = [1, 1]} : vector<9x512xf32> to vector<1x512xf32>
      %121 = arith.mulf %119, %120 : vector<1x512xf32>
      %122 = arith.maximumf %116, %121 : vector<1x512xf32>
      %123 = vector.extract_strided_slice %86 {offsets = [0, 1], sizes = [1, 511], strides = [1, 1]} : vector<1x512xf32> to vector<1x511xf32>
      %124 = vector.extract_strided_slice %86 {offsets = [0, 0], sizes = [1, 1], strides = [1, 1]} : vector<1x512xf32> to vector<1x1xf32>
      %125 = tpu.concatenate %123, %124 in 1 : vector<1x511xf32>, vector<1x1xf32> -> vector<1x512xf32>
      %126 = vector.extract_strided_slice %0 {offsets = [7, 0], sizes = [1, 512], strides = [1, 1]} : vector<9x512xf32> to vector<1x512xf32>
      %127 = arith.mulf %125, %126 : vector<1x512xf32>
      %128 = arith.maximumf %122, %127 : vector<1x512xf32>
      %129 = vector.extract_strided_slice %86 {offsets = [0, 17], sizes = [1, 495], strides = [1, 1]} : vector<1x512xf32> to vector<1x495xf32>
      %130 = vector.extract_strided_slice %86 {offsets = [0, 0], sizes = [1, 17], strides = [1, 1]} : vector<1x512xf32> to vector<1x17xf32>
      %131 = tpu.concatenate %129, %130 in 1 : vector<1x495xf32>, vector<1x17xf32> -> vector<1x512xf32>
      %132 = vector.extract_strided_slice %0 {offsets = [8, 0], sizes = [1, 512], strides = [1, 1]} : vector<9x512xf32> to vector<1x512xf32>
      %133 = arith.mulf %131, %132 : vector<1x512xf32>
      %134 = arith.maximumf %128, %133 : vector<1x512xf32>
      %cst_16 = arith.constant 1.000000e-01 : f32
      %135 = vector.broadcast %cst_16 : f32 to vector<1x512xf32>
      %136 = arith.cmpf ogt, %85, %135 : vector<1x512xf32>
      %cst_17 = arith.constant 1.000000e-01 : f32
      %137 = vector.broadcast %cst_17 : f32 to vector<1x512xf32>
      %138 = arith.cmpf ogt, %134, %137 : vector<1x512xf32>
      %139 = arith.andi %136, %138 : vector<1x512xi1>
      %140 = arith.extui %139 : vector<1x512xi1> to vector<1x512xi32>
      %141 = arith.sitofp %140 : vector<1x512xi32> to vector<1x512xf32>
      %142 = vector.broadcast %141 : vector<1x512xf32> to vector<4x512xf32>
      %143 = arith.mulf %68, %142 : vector<4x512xf32>
      scf.yield %143 : vector<4x512xf32>
    }
    %c2_i32_9 = arith.constant 2 : i32
    %c0_10 = arith.constant 0 : index
    %c0_11 = arith.constant 0 : index
    %7 = vector.load %arg6[%c0_10, %c0_11] : memref<4x512xf32, #tpu.memory_space<vmem>>, vector<4x512xf32>
    tpu.vector_store %arg6[%c0_10, %c0_11], %6 {strides = array<i32>} : memref<4x512xf32, #tpu.memory_space<vmem>>, vector<4x512xf32>,
    return
  }
}

</mosaic_0001>

<llo_original>
// kernel: ca_forward.1
$region0: #{ca_forward.1}
  #allocation0 [shape = 'u32[]', space=smem, size = 0x4, offset = 0x4, fixed_abs, tag = 'smem constant byte address 0x4 - core index']
  #allocation1 [shape = 'u32[144,128]{1,0:T(1,128)}', space=vmem, size = 0x12000, scoped, tag = 'internal scratch']
  %s0 = inlined_call_operand.vmem [shape: f32[4,512], index: 0, kind: input, shape index: {}]
  %s1 = inlined_call_operand.vmem [shape: f32[2,1,512], index: 1, kind: input, shape index: {}]
  %s2 = inlined_call_operand.vmem [shape: f32[9,512], index: 2, kind: input, shape index: {}]
  %s3 = inlined_call_operand.vmem [shape: f32[32,36], index: 3, kind: input, shape index: {}]
  %s4 = inlined_call_operand.vmem [shape: f32[32,1], index: 4, kind: input, shape index: {}]
  %s5 = inlined_call_operand.vmem [shape: f32[4,32], index: 5, kind: input, shape index: {}]
  %s6 = inlined_call_operand.vmem [shape: f32[4,512], index: 6, kind: output, shape index: {}]
  %s7 = sld [smem:[#allocation0]]
  $region41: #{ca_forward.1} parent=0
    _
  %s9 = ssub.s32 1, %s7
  %s10 = scalar_select 0, %s9, %s7
  // Predicated region
  $region2: #{ca_forward.1} parent=0 // pred_check
    _
  $region3: #{ca_forward.1} parent=0 // pred_check_branch
    %12 = sbr.rel (0) target = $region5
  $region4: #{ca_forward.1} parent=0 // pred_region
    _
  $region5: #{ca_forward.1} parent=0 // pred_fallthru
    _
  // Predicated region
  $region6: #{ca_forward.1} parent=0 // pred_check
    _
  $region7: #{ca_forward.1} parent=0 // pred_check_branch
    %14 = sbr.rel (0) target = $region9
  $region8: #{ca_forward.1} parent=0 // pred_region
    _
  $region9: #{ca_forward.1} parent=0 // pred_fallthru
    _
  // Predicated region
  $region10: #{ca_forward.1} parent=0 // pred_check
    _
  $region11: #{ca_forward.1} parent=0 // pred_check_branch
    %16 = sbr.rel (0) target = $region13
  $region12: #{ca_forward.1} parent=0 // pred_region
    _
  $region13: #{ca_forward.1} parent=0 // pred_fallthru
    _
  // Predicated region
  $region14: #{ca_forward.1} parent=0 // pred_check
    _
  $region15: #{ca_forward.1} parent=0 // pred_check_branch
    %18 = sbr.rel (0) target = $region17
  $region16: #{ca_forward.1} parent=0 // pred_region
    _
  $region17: #{ca_forward.1} parent=0 // pred_fallthru
    _
  // Predicated region
  $region18: #{ca_forward.1} parent=0 // pred_check
    _
  $region19: #{ca_forward.1} parent=0 // pred_check_branch
    %20 = sbr.rel (0) target = $region21
  $region20: #{ca_forward.1} parent=0 // pred_region
    _
  $region21: #{ca_forward.1} parent=0 // pred_fallthru
    _
  // Predicated region
  $region22: #{ca_forward.1} parent=0 // pred_check
    _
  $region23: #{ca_forward.1} parent=0 // pred_check_branch
    %22 = sbr.rel (0) target = $region25
  $region24: #{ca_forward.1} parent=0 // pred_region
    _
  $region25: #{ca_forward.1} parent=0 // pred_fallthru
    _
  %v23 = vld [vmem:[%s2] sm:$0xff]
  %v24 = vld [vmem:[%s2 + $0x8] sm:$0xff]
  %v25 = vld [vmem:[%s2 + $0x10] sm:$0xff]
  %v26 = vld [vmem:[%s2 + $0x18] sm:$0xff]
  %v27 = vld [vmem:[%s2 + $0x20] sm:$0x1]
  %v28 = vld [vmem:[%s2 + $0x28] sm:$0x1]
  %v29 = vld [vmem:[%s2 + $0x30] sm:$0x1]
  %v30 = vld [vmem:[%s2 + $0x38] sm:$0x1]
  %v31 = vld [vmem:[%s3] sm:$0xff]
  %v32 = vld [vmem:[%s3 + $0x8] sm:$0xff]
  %v33 = vld [vmem:[%s3 + $0x10] sm:$0xff]
  %v34 = vld [vmem:[%s3 + $0x18] sm:$0xff]
  %v35 = vld [vmem:[%s4] sm:$0xff]
  %v36 = vld [vmem:[%s4 + $0x8] sm:$0xff]
  %v37 = vld [vmem:[%s4 + $0x10] sm:$0xff]
  %v38 = vld [vmem:[%s4 + $0x18] sm:$0xff]
  %v39 = vld [vmem:[%s5] sm:$0xf]
  %v40 = vld [vmem:[%s0] sm:$0xff]
  %v41 = vld [vmem:[%s0 + $0x8] sm:$0xff]
  loop: start=0, step=1, limit=2
  $region26: #{ca_forward.1} parent=0 // loop_pre_header
    _
  $region27: #{ca_forward.1} parent=0 // loop_header
    %s43 = sphi 0, %s47
    %p44 = scmp.ge.s32.totalorder %s43, 2
    %v48 = vphi %v40, %v1230
    %v49 = vphi %v41, %v1231
  $region28: #{ca_forward.1} parent=0 // loop_header_branch
    %46 = sbr.rel (%p44) target = $region32
  $region29: #{ca_forward.1} parent=0 // loop_body
    %s50 = smul.u32 %s43, 4
    %s51 = scalar_lea.vmem %s1, %s50
    %v52 = vld [vmem:[%s51] sm:$0xf]
    %v54 = vcombine.high %v49, %v49
    %55 = vrot.lane.b32.xlu0 %v54, 17
    %v56 = vpop.permute.xlu0 %55
    %v59 = vcombine.high %v48, %v48
    %60 = vrot.lane.b32.xlu0 %v48, 17
    %v61 = vpop.permute.xlu0 %60
    %62 = vrot.lane.b32.xlu0 %v59, 17
    %v63 = vpop.permute.xlu0 %62
    %64 = vrot.lane.b32.xlu0 %v49, 17
    %v65 = vpop.permute.xlu0 %64
    %vm66 = vcmask 138240
    %v67 = vsel %vm66, %v61, %v63
    %v68 = vsel %vm66, %v63, %v65
    %v69 = vsel %vm66, %v65, %v56
    %v74 = vsel %vm66, %v56, %v61
    %v75 = vlaneseq
    %v76 = vshrl.u32 %v75, 7
    %v77 = vsub.s32 0, %v76
    %v78 = vrot.slane %v23, %v77
    %v79 = vlaneseq
    %v80 = vshrl.u32 %v79, 7
    %v81 = vsub.s32 0, %v80
    %v82 = vrot.slane %v24, %v81
    %v83 = vlaneseq
    %v84 = vshrl.u32 %v83, 7
    %v85 = vsub.s32 0, %v84
    %v86 = vrot.slane %v25, %v85
    %v87 = vlaneseq
    %v88 = vshrl.u32 %v87, 7
    %v89 = vsub.s32 0, %v88
    %v90 = vrot.slane %v26, %v89
    %v91 = vmul.f32 %v74, %v78
    %v92 = vmul.f32 %v67, %v82
    %v93 = vmul.f32 %v68, %v86
    %v94 = vmul.f32 %v69, %v90
    %95 = vrot.lane.b32.xlu0 %v54, 1
    %v96 = vpop.permute.xlu0 %95
    %98 = vrot.lane.b32.xlu0 %v48, 1
    %v99 = vpop.permute.xlu0 %98
    %100 = vrot.lane.b32.xlu0 %v59, 1
    %v101 = vpop.permute.xlu0 %100
    %102 = vrot.lane.b32.xlu0 %v49, 1
    %v103 = vpop.permute.xlu0 %102
    %vm104 = vcmask 7168
    %v105 = vsel %vm104, %v99, %v101
    %v106 = vsel %vm104, %v101, %v103
    %v107 = vsel %vm104, %v103, %v96
    %v112 = vsel %vm104, %v96, %v99
    %v113 = vlaneseq
    %v114 = vshrl.u32 %v113, 7
    %v115 = vsub.s32 1, %v114
    %v116 = vrot.slane %v23, %v115
    %v117 = vlaneseq
    %v118 = vshrl.u32 %v117, 7
    %v119 = vsub.s32 1, %v118
    %v120 = vrot.slane %v24, %v119
    %v121 = vlaneseq
    %v122 = vshrl.u32 %v121, 7
    %v123 = vsub.s32 1, %v122
    %v124 = vrot.slane %v25, %v123
    %v125 = vlaneseq
    %v126 = vshrl.u32 %v125, 7
    %v127 = vsub.s32 1, %v126
    %v128 = vrot.slane %v26, %v127
    %v129 = vmul.f32 %v112, %v116
    %v130 = vmul.f32 %v105, %v120
    %v131 = vmul.f32 %v106, %v124
    %v132 = vmul.f32 %v107, %v128
    %133 = vrot.lane.b32.xlu0 %v48, 113
    %v134 = vpop.permute.xlu0 %133
    %135 = vrot.lane.b32.xlu0 %v59, 113
    %v136 = vpop.permute.xlu0 %135
    %137 = vrot.lane.b32.xlu0 %v49, 113
    %v138 = vpop.permute.xlu0 %137
    %139 = vrot.lane.b32.xlu0 %v54, 113
    %v140 = vpop.permute.xlu0 %139
    %vm141 = vcmask 924672
    %v142 = vsel %vm141, %v134, %v136
    %v143 = vsel %vm141, %v136, %v138
    %v144 = vsel %vm141, %v138, %v140
    %v150 = vsel %vm141, %v140, %v134
    %v151 = vlaneseq
    %v152 = vshrl.u32 %v151, 7
    %v153 = vsub.s32 2, %v152
    %v154 = vrot.slane %v23, %v153
    %v155 = vlaneseq
    %v156 = vshrl.u32 %v155, 7
    %v157 = vsub.s32 2, %v156
    %v158 = vrot.slane %v24, %v157
    %v159 = vlaneseq
    %v160 = vshrl.u32 %v159, 7
    %v161 = vsub.s32 2, %v160
    %v162 = vrot.slane %v25, %v161
    %v163 = vlaneseq
    %v164 = vshrl.u32 %v163, 7
    %v165 = vsub.s32 2, %v164
    %v166 = vrot.slane %v26, %v165
    %v167 = vmul.f32 %v142, %v154
    %v168 = vmul.f32 %v143, %v158
    %v169 = vmul.f32 %v144, %v162
    %v170 = vmul.f32 %v150, %v166
    %171 = vrot.lane.b32.xlu0 %v54, 16
    %v172 = vpop.permute.xlu0 %171
    %174 = vrot.lane.b32.xlu0 %v48, 16
    %v175 = vpop.permute.xlu0 %174
    %176 = vrot.lane.b32.xlu0 %v59, 16
    %v177 = vpop.permute.xlu0 %176
    %178 = vrot.lane.b32.xlu0 %v49, 16
    %v179 = vpop.permute.xlu0 %178
    %vm180 = vcmask 130048
    %v181 = vsel %vm180, %v175, %v177
    %v182 = vsel %vm180, %v177, %v179
    %v183 = vsel %vm180, %v179, %v172
    %v188 = vsel %vm180, %v172, %v175
    %v189 = vlaneseq
    %v190 = vshrl.u32 %v189, 7
    %v191 = vsub.s32 3, %v190
    %v192 = vrot.slane %v23, %v191
    %v193 = vlaneseq
    %v194 = vshrl.u32 %v193, 7
    %v195 = vsub.s32 3, %v194
    %v196 = vrot.slane %v24, %v195
    %v197 = vlaneseq
    %v198 = vshrl.u32 %v197, 7
    %v199 = vsub.s32 3, %v198
    %v200 = vrot.slane %v25, %v199
    %v201 = vlaneseq
    %v202 = vshrl.u32 %v201, 7
    %v203 = vsub.s32 3, %v202
    %v204 = vrot.slane %v26, %v203
    %v205 = vmul.f32 %v188, %v192
    %v206 = vmul.f32 %v181, %v196
    %v207 = vmul.f32 %v182, %v200
    %v208 = vmul.f32 %v183, %v204
    %209 = vrot.lane.b32.xlu0 %v48, 112
    %v210 = vpop.permute.xlu0 %209
    %211 = vrot.lane.b32.xlu0 %v59, 112
    %v212 = vpop.permute.xlu0 %211
    %213 = vrot.lane.b32.xlu0 %v49, 112
    %v214 = vpop.permute.xlu0 %213
    %215 = vrot.lane.b32.xlu0 %v54, 112
    %v216 = vpop.permute.xlu0 %215
    %vm217 = vcmask 916480
    %v218 = vsel %vm217, %v210, %v212
    %v219 = vsel %vm217, %v212, %v214
    %v220 = vsel %vm217, %v214, %v216
    %v226 = vsel %vm217, %v216, %v210
    %v227 = vlaneseq
    %v228 = vshrl.u32 %v227, 7
    %v229 = vsub.s32 5, %v228
    %v230 = vrot.slane %v23, %v229
    %v231 = vlaneseq
    %v232 = vshrl.u32 %v231, 7
    %v233 = vsub.s32 5, %v232
    %v234 = vrot.slane %v24, %v233
    %v235 = vlaneseq
    %v236 = vshrl.u32 %v235, 7
    %v237 = vsub.s32 5, %v236
    %v238 = vrot.slane %v25, %v237
    %v239 = vlaneseq
    %v240 = vshrl.u32 %v239, 7
    %v241 = vsub.s32 5, %v240
    %v242 = vrot.slane %v26, %v241
    %v243 = vmul.f32 %v218, %v230
    %v244 = vmul.f32 %v219, %v234
    %v245 = vmul.f32 %v220, %v238
    %v246 = vmul.f32 %v226, %v242
    %247 = vrot.lane.b32.xlu0 %v54, 15
    %v248 = vpop.permute.xlu0 %247
    %250 = vrot.lane.b32.xlu0 %v48, 15
    %v251 = vpop.permute.xlu0 %250
    %252 = vrot.lane.b32.xlu0 %v59, 15
    %v253 = vpop.permute.xlu0 %252
    %254 = vrot.lane.b32.xlu0 %v49, 15
    %v255 = vpop.permute.xlu0 %254
    %vm256 = vcmask 121856
    %v257 = vsel %vm256, %v251, %v253
    %v258 = vsel %vm256, %v253, %v255
    %v259 = vsel %vm256, %v255, %v248
    %v264 = vsel %vm256, %v248, %v251
    %v265 = vlaneseq
    %v266 = vshrl.u32 %v265, 7
    %v267 = vsub.s32 6, %v266
    %v268 = vrot.slane %v23, %v267
    %v269 = vlaneseq
    %v270 = vshrl.u32 %v269, 7
    %v271 = vsub.s32 6, %v270
    %v272 = vrot.slane %v24, %v271
    %v273 = vlaneseq
    %v274 = vshrl.u32 %v273, 7
    %v275 = vsub.s32 6, %v274
    %v276 = vrot.slane %v25, %v275
    %v277 = vlaneseq
    %v278 = vshrl.u32 %v277, 7
    %v279 = vsub.s32 6, %v278
    %v280 = vrot.slane %v26, %v279
    %v281 = vmul.f32 %v264, %v268
    %v282 = vmul.f32 %v257, %v272
    %v283 = vmul.f32 %v258, %v276
    %v284 = vmul.f32 %v259, %v280
    %285 = vrot.lane.b32.xlu0 %v48, 127
    %v286 = vpop.permute.xlu0 %285
    %287 = vrot.lane.b32.xlu0 %v59, 127
    %v288 = vpop.permute.xlu0 %287
    %289 = vrot.lane.b32.xlu0 %v49, 127
    %v290 = vpop.permute.xlu0 %289
    %291 = vrot.lane.b32.xlu0 %v54, 127
    %v292 = vpop.permute.xlu0 %291
    %vm293 = vcmask 1039360
    %v294 = vsel %vm293, %v286, %v288
    %v295 = vsel %vm293, %v288, %v290
    %v296 = vsel %vm293, %v290, %v292
    %v302 = vsel %vm293, %v292, %v286
    %v303 = vlaneseq
    %v304 = vshrl.u32 %v303, 7
    %v305 = vsub.s32 7, %v304
    %v306 = vrot.slane %v23, %v305
    %v307 = vlaneseq
    %v308 = vshrl.u32 %v307, 7
    %v309 = vsub.s32 7, %v308
    %v310 = vrot.slane %v24, %v309
    %v311 = vlaneseq
    %v312 = vshrl.u32 %v311, 7
    %v313 = vsub.s32 7, %v312
    %v314 = vrot.slane %v25, %v313
    %v315 = vlaneseq
    %v316 = vshrl.u32 %v315, 7
    %v317 = vsub.s32 7, %v316
    %v318 = vrot.slane %v26, %v317
    %v319 = vmul.f32 %v294, %v306
    %v320 = vmul.f32 %v295, %v310
    %v321 = vmul.f32 %v296, %v314
    %v322 = vmul.f32 %v302, %v318
    %323 = vrot.lane.b32.xlu0 %v48, 111
    %v324 = vpop.permute.xlu0 %323
    %325 = vrot.lane.b32.xlu0 %v59, 111
    %v326 = vpop.permute.xlu0 %325
    %327 = vrot.lane.b32.xlu0 %v49, 111
    %v328 = vpop.permute.xlu0 %327
    %329 = vrot.lane.b32.xlu0 %v54, 111
    %v330 = vpop.permute.xlu0 %329
    %vm331 = vcmask 908288
    %v332 = vsel %vm331, %v324, %v326
    %v333 = vsel %vm331, %v326, %v328
    %v334 = vsel %vm331, %v328, %v330
    %v340 = vsel %vm331, %v330, %v324
    %v341 = vlaneseq
    %v342 = vshrl.u32 %v341, 7
    %v343 = vsub.s32 0, %v342
    %v344 = vrot.slane %v27, %v343
    %v345 = vlaneseq
    %v346 = vshrl.u32 %v345, 7
    %v347 = vsub.s32 0, %v346
    %v348 = vrot.slane %v28, %v347
    %v349 = vlaneseq
    %v350 = vshrl.u32 %v349, 7
    %v351 = vsub.s32 0, %v350
    %v352 = vrot.slane %v29, %v351
    %v353 = vlaneseq
    %v354 = vshrl.u32 %v353, 7
    %v355 = vsub.s32 0, %v354
    %v356 = vrot.slane %v30, %v355
    %v357 = vmul.f32 %v332, %v344
    %v358 = vmul.f32 %v333, %v348
    %v359 = vmul.f32 %v334, %v352
    %v360 = vmul.f32 %v340, %v356
    %v365 = vrot.slane %v129, 4
    %v366 = vrot.slane %v130, 4
    %v367 = vrot.slane %v131, 4
    %v368 = vrot.slane %v132, 4
    %v377 = vrot.slane %v205, 4
    %v378 = vrot.slane %v206, 4
    %v379 = vrot.slane %v207, 4
    %v380 = vrot.slane %v208, 4
    %v391 = vrot.slane %v243, 4
    %v392 = vrot.slane %v244, 4
    %v393 = vrot.slane %v245, 4
    %v394 = vrot.slane %v246, 4
    %v403 = vrot.slane %v319, 4
    %v404 = vrot.slane %v320, 4
    %v405 = vrot.slane %v321, 4
    %v406 = vrot.slane %v322, 4
    %vm411 = vcmask 1043456
    %v412 = vsel %vm411, %v91, %v365
    %v413 = vsel %vm411, %v92, %v366
    %v414 = vsel %vm411, %v93, %v367
    %v415 = vsel %vm411, %v94, %v368
    %v416 = vsel %vm411, %v167, %v377
    %v417 = vsel %vm411, %v168, %v378
    %v418 = vsel %vm411, %v169, %v379
    %v419 = vsel %vm411, %v170, %v380
    %v420 = vsel %vm411, %v48, %v391
    %v421 = vsel %vm411, %v59, %v392
    %v422 = vsel %vm411, %v49, %v393
    %v423 = vsel %vm411, %v54, %v394
    %v424 = vsel %vm411, %v281, %v403
    %v425 = vsel %vm411, %v282, %v404
    %v426 = vsel %vm411, %v283, %v405
    %v427 = vsel %vm411, %v284, %v406
    %429 = vset.pattern.permute.xlu0 0
    %430 = vperm.xlu0 %429, %v35
    %v431 = vpop.permute.xlu0 %430
    %434 = vset.pattern.permute.xlu0 0
    %435 = vperm.xlu0 %434, %v36
    %v436 = vpop.permute.xlu0 %435
    %439 = vset.pattern.permute.xlu0 0
    %440 = vperm.xlu0 %439, %v37
    %v441 = vpop.permute.xlu0 %440
    %444 = vset.pattern.permute.xlu0 0
    %445 = vperm.xlu0 %444, %v38
    %v446 = vpop.permute.xlu0 %445
    %vm448 = vcmask 293888
    %v450 = vsel %vm448, %v31, 0
    %v453 = vsel %vm448, %v32, 0
    %v456 = vsel %vm448, %v33, 0
    %v459 = vsel %vm448, %v34, 0
    %v462 = vsel %vm411, %v357, 0
    %v465 = vsel %vm411, %v358, 0
    %v468 = vsel %vm411, %v359, 0
    %v471 = vsel %vm411, %v360, 0
    %473 = vmatprep.subr.mxu0 %v413
    %474 = vmatpush1.msra.mxu0 %v412
    %475 = vmatprep.subr.mxu0 %v417
    %476 = vmatpush1.msra.mxu0 %v416
    %477 = vmatprep.subr.mxu0 %v421
    %478 = vmatpush1.msra.mxu0 %v420
    %479 = vmatprep.subr.mxu0 %v425
    %480 = vmatpush1.msra.mxu0 %v424
    %481 = vmatprep.subr.mxu0 %v465
    %482 = vmatpush1.msra.mxu0 %v462
    %483 = vmatprep.subr.mxu0 0.0
    %484 = vmatpush1.msra.mxu0 0.0
    %485 = vmatprep.subr.mxu0 0.0
    %486 = vmatpush1.msra.mxu0 0.0
    %487 = vmatprep.subr.mxu0 0.0
    %488 = vmatpush1.msra.mxu0 0.0
    %489 = vmatprep.subr.mxu0 0.0
    %490 = vmatpush1.msra.mxu0 0.0
    %491 = vmatprep.subr.mxu0 0.0
    %492 = vmatpush1.msra.mxu0 0.0
    %493 = vmatprep.subr.mxu0 0.0
    %494 = vmatpush1.msra.mxu0 0.0
    %495 = vmatprep.subr.mxu0 0.0
    %496 = vmatpush1.msra.mxu0 0.0
    %497 = vmatprep.subr.mxu0 0.0
    %498 = vmatpush1.msra.mxu0 0.0
    %499 = vmatprep.subr.mxu0 0.0
    %500 = vmatpush1.msra.mxu0 0.0
    %501 = vmatprep.subr.mxu0 0.0
    %502 = vmatpush1.msra.mxu0 0.0
    %503 = vmatprep.subr.mxu0 0.0
    %504 = vmatpush1.msra.mxu0 0.0
    %505 = vmatprep.subr.mxu0 0.0
    %506 = vmatpush1.msra.mxu0 0.0
    %507 = vmatprep.subr.mxu0 0.0
    %508 = vmatpush1.msra.mxu0 0.0
    %509 = vmatprep.subr.mxu0 0.0
    %510 = vmatpush1.msra.mxu0 0.0
    %511 = vmatprep.subr.mxu0 0.0
    %512 = vmatpush1.msra.mxu0 0.0
    %513 = vmatprep.subr.mxu0 0.0
    %514 = vmatpush1.msra.mxu0 0.0
    %515 = vmatprep.subr.mxu0 0.0
    %516 = vmatpush1.msra.mxu0 0.0
    %517 = vmatprep.subr.mxu0 0.0
    %518 = vmatpush1.msra.mxu0 0.0
    %519 = vmatprep.subr.mxu0 0.0
    %520 = vmatpush1.msra.mxu0 0.0
    %521 = vmatprep.subr.mxu0 0.0
    %522 = vmatpush1.msra.mxu0 0.0
    %523 = vmatprep.subr.mxu0 0.0
    %524 = vmatpush1.msra.mxu0 0.0
    %525 = vmatprep.subr.mxu0 0.0
    %526 = vmatpush1.msra.mxu0 0.0
    %527 = vmatprep.subr.mxu0 0.0
    %528 = vmatpush1.msra.mxu0 0.0
    %529 = vmatprep.subr.mxu0 0.0
    %530 = vmatpush1.msra.mxu0 0.0
    %531 = vmatprep.subr.mxu0 0.0
    %532 = vmatpush1.msra.mxu0 0.0
    %533 = vmatprep.subr.mxu0 0.0
    %534 = vmatpush1.msra.mxu0 0.0
    %535 = vmatprep.subr.mxu0 0.0
    %536 = vmatpush1.msra.mxu0 0.0
    %537 = vmatprep.mubr.f32.mxu0 0.0
    %538 = vmatmul.mubr.f32.gmra.mrb[0].mxu0 %v450
    %v539 = vpop.f32.mrb[0].mxu0
    %v540 = vadd.f32 %v431, %v539
    %v541 = vpop.f32.mrb[0].mxu0
    %v542 = vadd.f32 %v431, %v541
    %543 = vmatprep.mubr.f32.mxu0 0.0
    %544 = vmatmul.mubr.f32.gmra.mrb[0].mxu0 %v453
    %v545 = vpop.f32.mrb[0].mxu0
    %v546 = vadd.f32 %v436, %v545
    %v547 = vpop.f32.mrb[0].mxu0
    %v548 = vadd.f32 %v436, %v547
    %549 = vmatprep.mubr.f32.mxu0 0.0
    %550 = vmatmul.mubr.f32.gmra.mrb[0].mxu0 %v456
    %v551 = vpop.f32.mrb[0].mxu0
    %v552 = vadd.f32 %v441, %v551
    %v553 = vpop.f32.mrb[0].mxu0
    %v554 = vadd.f32 %v441, %v553
    %555 = vmatprep.mubr.f32.mxu0 0.0
    %556 = vmatmul.mubr.f32.gmra.mrb[0].mxu0 %v459
    %v557 = vpop.f32.mrb[0].mxu0
    %v558 = vadd.f32 %v446, %v557
    %v559 = vpop.f32.mrb[0].mxu0
    %v560 = vadd.f32 %v446, %v559
    %561 = vdwg.mxu0
    %562 = vmatprep.subr.mxu0 %v415
    %563 = vmatpush1.msra.mxu0 %v414
    %564 = vmatprep.subr.mxu0 %v419
    %565 = vmatpush1.msra.mxu0 %v418
    %566 = vmatprep.subr.mxu0 %v423
    %567 = vmatpush1.msra.mxu0 %v422
    %568 = vmatprep.subr.mxu0 %v427
    %569 = vmatpush1.msra.mxu0 %v426
    %570 = vmatprep.subr.mxu0 %v471
    %571 = vmatpush1.msra.mxu0 %v468
    %572 = vmatprep.subr.mxu0 0.0
    %573 = vmatpush1.msra.mxu0 0.0
    %574 = vmatprep.subr.mxu0 0.0
    %575 = vmatpush1.msra.mxu0 0.0
    %576 = vmatprep.subr.mxu0 0.0
    %577 = vmatpush1.msra.mxu0 0.0
    %578 = vmatprep.subr.mxu0 0.0
    %579 = vmatpush1.msra.mxu0 0.0
    %580 = vmatprep.subr.mxu0 0.0
    %581 = vmatpush1.msra.mxu0 0.0
    %582 = vmatprep.subr.mxu0 0.0
    %583 = vmatpush1.msra.mxu0 0.0
    %584 = vmatprep.subr.mxu0 0.0
    %585 = vmatpush1.msra.mxu0 0.0
    %586 = vmatprep.subr.mxu0 0.0
    %587 = vmatpush1.msra.mxu0 0.0
    %588 = vmatprep.subr.mxu0 0.0
    %589 = vmatpush1.msra.mxu0 0.0
    %590 = vmatprep.subr.mxu0 0.0
    %591 = vmatpush1.msra.mxu0 0.0
    %592 = vmatprep.subr.mxu0 0.0
    %593 = vmatpush1.msra.mxu0 0.0
    %594 = vmatprep.subr.mxu0 0.0
    %595 = vmatpush1.msra.mxu0 0.0
    %596 = vmatprep.subr.mxu0 0.0
    %597 = vmatpush1.msra.mxu0 0.0
    %598 = vmatprep.subr.mxu0 0.0
    %599 = vmatpush1.msra.mxu0 0.0
    %600 = vmatprep.subr.mxu0 0.0
    %601 = vmatpush1.msra.mxu0 0.0
    %602 = vmatprep.subr.mxu0 0.0
    %603 = vmatpush1.msra.mxu0 0.0
    %604 = vmatprep.subr.mxu0 0.0
    %605 = vmatpush1.msra.mxu0 0.0
    %606 = vmatprep.subr.mxu0 0.0
    %607 = vmatpush1.msra.mxu0 0.0
    %608 = vmatprep.subr.mxu0 0.0
    %609 = vmatpush1.msra.mxu0 0.0
    %610 = vmatprep.subr.mxu0 0.0
    %611 = vmatpush1.msra.mxu0 0.0
    %612 = vmatprep.subr.mxu0 0.0
    %613 = vmatpush1.msra.mxu0 0.0
    %614 = vmatprep.subr.mxu0 0.0
    %615 = vmatpush1.msra.mxu0 0.0
    %616 = vmatprep.subr.mxu0 0.0
    %617 = vmatpush1.msra.mxu0 0.0
    %618 = vmatprep.subr.mxu0 0.0
    %619 = vmatpush1.msra.mxu0 0.0
    %620 = vmatprep.subr.mxu0 0.0
    %621 = vmatpush1.msra.mxu0 0.0
    %622 = vmatprep.subr.mxu0 0.0
    %623 = vmatpush1.msra.mxu0 0.0
    %624 = vmatprep.subr.mxu0 0.0
    %625 = vmatpush1.msra.mxu0 0.0
    %626 = vmatprep.mubr.f32.mxu0 0.0
    %627 = vmatmul.mubr.f32.gmra.mrb[0].mxu0 %v450
    %v628 = vpop.f32.mrb[0].mxu0
    %v629 = vadd.f32 %v431, %v628
    %v630 = vpop.f32.mrb[0].mxu0
    %v631 = vadd.f32 %v431, %v630
    %632 = vmatprep.mubr.f32.mxu0 0.0
    %633 = vmatmul.mubr.f32.gmra.mrb[0].mxu0 %v453
    %v634 = vpop.f32.mrb[0].mxu0
    %v635 = vadd.f32 %v436, %v634
    %v636 = vpop.f32.mrb[0].mxu0
    %v637 = vadd.f32 %v436, %v636
    %638 = vmatprep.mubr.f32.mxu0 0.0
    %639 = vmatmul.mubr.f32.gmra.mrb[0].mxu0 %v456
    %v640 = vpop.f32.mrb[0].mxu0
    %v641 = vadd.f32 %v441, %v640
    %v642 = vpop.f32.mrb[0].mxu0
    %v643 = vadd.f32 %v441, %v642
    %644 = vmatprep.mubr.f32.mxu0 0.0
    %645 = vmatmul.mubr.f32.gmra.mrb[0].mxu0 %v459
    %v646 = vpop.f32.mrb[0].mxu0
    %v647 = vadd.f32 %v446, %v646
    %v648 = vpop.f32.mrb[0].mxu0
    %v649 = vadd.f32 %v446, %v648
    %650 = vdwg.mxu0
    %v651 = vmax.f32 %v540, 0.0
    %v652 = vmax.f32 %v542, 0.0
    %v653 = vmax.f32 %v629, 0.0
    %v654 = vmax.f32 %v631, 0.0
    %v655 = vmax.f32 %v546, 0.0
    %v656 = vmax.f32 %v548, 0.0
    %v657 = vmax.f32 %v635, 0.0
    %v658 = vmax.f32 %v637, 0.0
    %v659 = vmax.f32 %v552, 0.0
    %v660 = vmax.f32 %v554, 0.0
    %v661 = vmax.f32 %v641, 0.0
    %v662 = vmax.f32 %v643, 0.0
    %v663 = vmax.f32 %v558, 0.0
    %v664 = vmax.f32 %v560, 0.0
    %v665 = vmax.f32 %v647, 0.0
    %v666 = vmax.f32 %v649, 0.0
    %vm667 = vcmask 261120
    %v669 = vsel %vm667, %v39, 0
    %671 = vmatprep.subr.mxu0 %v652
    %672 = vmatpush1.msra.mxu0 %v651
    %673 = vmatprep.subr.mxu0 %v656
    %674 = vmatpush1.msra.mxu0 %v655
    %675 = vmatprep.subr.mxu0 %v660
    %676 = vmatpush1.msra.mxu0 %v659
    %677 = vmatprep.subr.mxu0 %v664
    %678 = vmatpush1.msra.mxu0 %v663
    %679 = vmatprep.subr.mxu0 0.0
    %680 = vmatpush1.msra.mxu0 0.0
    %681 = vmatprep.subr.mxu0 0.0
    %682 = vmatpush1.msra.mxu0 0.0
    %683 = vmatprep.subr.mxu0 0.0
    %684 = vmatpush1.msra.mxu0 0.0
    %685 = vmatprep.subr.mxu0 0.0
    %686 = vmatpush1.msra.mxu0 0.0
    %687 = vmatprep.subr.mxu0 0.0
    %688 = vmatpush1.msra.mxu0 0.0
    %689 = vmatprep.subr.mxu0 0.0
    %690 = vmatpush1.msra.mxu0 0.0
    %691 = vmatprep.subr.mxu0 0.0
    %692 = vmatpush1.msra.mxu0 0.0
    %693 = vmatprep.subr.mxu0 0.0
    %694 = vmatpush1.msra.mxu0 0.0
    %695 = vmatprep.subr.mxu0 0.0
    %696 = vmatpush1.msra.mxu0 0.0
    %697 = vmatprep.subr.mxu0 0.0
    %698 = vmatpush1.msra.mxu0 0.0
    %699 = vmatprep.subr.mxu0 0.0
    %700 = vmatpush1.msra.mxu0 0.0
    %701 = vmatprep.subr.mxu0 0.0
    %702 = vmatpush1.msra.mxu0 0.0
    %703 = vmatprep.subr.mxu0 0.0
    %704 = vmatpush1.msra.mxu0 0.0
    %705 = vmatprep.subr.mxu0 0.0
    %706 = vmatpush1.msra.mxu0 0.0
    %707 = vmatprep.subr.mxu0 0.0
    %708 = vmatpush1.msra.mxu0 0.0
    %709 = vmatprep.subr.mxu0 0.0
    %710 = vmatpush1.msra.mxu0 0.0
    %711 = vmatprep.subr.mxu0 0.0
    %712 = vmatpush1.msra.mxu0 0.0
    %713 = vmatprep.subr.mxu0 0.0
    %714 = vmatpush1.msra.mxu0 0.0
    %715 = vmatprep.subr.mxu0 0.0
    %716 = vmatpush1.msra.mxu0 0.0
    %717 = vmatprep.subr.mxu0 0.0
    %718 = vmatpush1.msra.mxu0 0.0
    %719 = vmatprep.subr.mxu0 0.0
    %720 = vmatpush1.msra.mxu0 0.0
    %721 = vmatprep.subr.mxu0 0.0
    %722 = vmatpush1.msra.mxu0 0.0
    %723 = vmatprep.subr.mxu0 0.0
    %724 = vmatpush1.msra.mxu0 0.0
    %725 = vmatprep.subr.mxu0 0.0
    %726 = vmatpush1.msra.mxu0 0.0
    %727 = vmatprep.subr.mxu0 0.0
    %728 = vmatpush1.msra.mxu0 0.0
    %729 = vmatprep.subr.mxu0 0.0
    %730 = vmatpush1.msra.mxu0 0.0
    %731 = vmatprep.subr.mxu0 0.0
    %732 = vmatpush1.msra.mxu0 0.0
    %733 = vmatprep.subr.mxu0 0.0
    %734 = vmatpush1.msra.mxu0 0.0
    %735 = vmatprep.mubr.f32.mxu0 0.0
    %736 = vmatmul.mubr.f32.gmra.mrb[0].mxu0 %v669
    %v737 = vpop.f32.mrb[0].mxu0
    %v738 = vadd.f32 0.0, %v737
    %v739 = vpop.f32.mrb[0].mxu0
    %v740 = vadd.f32 0.0, %v739
    %741 = vdwg.mxu0
    %742 = vmatprep.subr.mxu0 %v654
    %743 = vmatpush1.msra.mxu0 %v653
    %744 = vmatprep.subr.mxu0 %v658
    %745 = vmatpush1.msra.mxu0 %v657
    %746 = vmatprep.subr.mxu0 %v662
    %747 = vmatpush1.msra.mxu0 %v661
    %748 = vmatprep.subr.mxu0 %v666
    %749 = vmatpush1.msra.mxu0 %v665
    %750 = vmatprep.subr.mxu0 0.0
    %751 = vmatpush1.msra.mxu0 0.0
    %752 = vmatprep.subr.mxu0 0.0
    %753 = vmatpush1.msra.mxu0 0.0
    %754 = vmatprep.subr.mxu0 0.0
    %755 = vmatpush1.msra.mxu0 0.0
    %756 = vmatprep.subr.mxu0 0.0
    %757 = vmatpush1.msra.mxu0 0.0
    %758 = vmatprep.subr.mxu0 0.0
    %759 = vmatpush1.msra.mxu0 0.0
    %760 = vmatprep.subr.mxu0 0.0
    %761 = vmatpush1.msra.mxu0 0.0
    %762 = vmatprep.subr.mxu0 0.0
    %763 = vmatpush1.msra.mxu0 0.0
    %764 = vmatprep.subr.mxu0 0.0
    %765 = vmatpush1.msra.mxu0 0.0
    %766 = vmatprep.subr.mxu0 0.0
    %767 = vmatpush1.msra.mxu0 0.0
    %768 = vmatprep.subr.mxu0 0.0
    %769 = vmatpush1.msra.mxu0 0.0
    %770 = vmatprep.subr.mxu0 0.0
    %771 = vmatpush1.msra.mxu0 0.0
    %772 = vmatprep.subr.mxu0 0.0
    %773 = vmatpush1.msra.mxu0 0.0
    %774 = vmatprep.subr.mxu0 0.0
    %775 = vmatpush1.msra.mxu0 0.0
    %776 = vmatprep.subr.mxu0 0.0
    %777 = vmatpush1.msra.mxu0 0.0
    %778 = vmatprep.subr.mxu0 0.0
    %779 = vmatpush1.msra.mxu0 0.0
    %780 = vmatprep.subr.mxu0 0.0
    %781 = vmatpush1.msra.mxu0 0.0
    %782 = vmatprep.subr.mxu0 0.0
    %783 = vmatpush1.msra.mxu0 0.0
    %784 = vmatprep.subr.mxu0 0.0
    %785 = vmatpush1.msra.mxu0 0.0
    %786 = vmatprep.subr.mxu0 0.0
    %787 = vmatpush1.msra.mxu0 0.0
    %788 = vmatprep.subr.mxu0 0.0
    %789 = vmatpush1.msra.mxu0 0.0
    %790 = vmatprep.subr.mxu0 0.0
    %791 = vmatpush1.msra.mxu0 0.0
    %792 = vmatprep.subr.mxu0 0.0
    %793 = vmatpush1.msra.mxu0 0.0
    %794 = vmatprep.subr.mxu0 0.0
    %795 = vmatpush1.msra.mxu0 0.0
    %796 = vmatprep.subr.mxu0 0.0
    %797 = vmatpush1.msra.mxu0 0.0
    %798 = vmatprep.subr.mxu0 0.0
    %799 = vmatpush1.msra.mxu0 0.0
    %800 = vmatprep.subr.mxu0 0.0
    %801 = vmatpush1.msra.mxu0 0.0
    %802 = vmatprep.subr.mxu0 0.0
    %803 = vmatpush1.msra.mxu0 0.0
    %804 = vmatprep.subr.mxu0 0.0
    %805 = vmatpush1.msra.mxu0 0.0
    %806 = vmatprep.mubr.f32.mxu0 0.0
    %807 = vmatmul.mubr.f32.gmra.mrb[0].mxu0 %v669
    %v808 = vpop.f32.mrb[0].mxu0
    %v809 = vadd.f32 0.0, %v808
    %v810 = vpop.f32.mrb[0].mxu0
    %v811 = vadd.f32 0.0, %v810
    %812 = vdwg.mxu0
    %v814 = vlaneseq
    %v815 = vshrl.u32 %v814, 7
    %v816 = vsub.s32 0, %v815
    %v817 = vrot.slane %v52, %v816
    %v818 = vlaneseq
    %v819 = vshrl.u32 %v818, 7
    %v820 = vsub.s32 1, %v819
    %v821 = vrot.slane %v52, %v820
    %v822 = vlaneseq
    %v823 = vshrl.u32 %v822, 7
    %v824 = vsub.s32 2, %v823
    %v825 = vrot.slane %v52, %v824
    %v826 = vlaneseq
    %v827 = vshrl.u32 %v826, 7
    %v828 = vsub.s32 3, %v827
    %v829 = vrot.slane %v52, %v828
    %v834 = vmul.f32 %v738, %v817
    %v835 = vmul.f32 %v740, %v821
    %v836 = vmul.f32 %v809, %v825
    %v837 = vmul.f32 %v811, %v829
    %v842 = vcombine.low %v834, %v835
    %v843 = vcombine.low %v836, %v837
    %v846 = vadd.f32 %v48, %v842
    %v847 = vadd.f32 %v49, %v843
    %v848 = vmax.f32 %v91, %v129
    %v849 = vmax.f32 %v92, %v130
    %v850 = vmax.f32 %v93, %v131
    %v851 = vmax.f32 %v94, %v132
    %v852 = vmax.f32 %v848, %v167
    %v853 = vmax.f32 %v849, %v168
    %v854 = vmax.f32 %v850, %v169
    %v855 = vmax.f32 %v851, %v170
    %v856 = vmax.f32 %v852, %v205
    %v857 = vmax.f32 %v853, %v206
    %v858 = vmax.f32 %v854, %v207
    %v859 = vmax.f32 %v855, %v208
    %v860 = vlaneseq
    %v861 = vshrl.u32 %v860, 7
    %v862 = vsub.s32 3, %v861
    %v863 = vrot.slane %v48, %v862
    %v864 = vlaneseq
    %v865 = vshrl.u32 %v864, 7
    %v866 = vsub.s32 7, %v865
    %v867 = vrot.slane %v48, %v866
    %v868 = vlaneseq
    %v869 = vshrl.u32 %v868, 7
    %v870 = vsub.s32 3, %v869
    %v871 = vrot.slane %v49, %v870
    %v872 = vlaneseq
    %v873 = vshrl.u32 %v872, 7
    %v874 = vsub.s32 7, %v873
    %v875 = vrot.slane %v49, %v874
    %v880 = vmax.f32 %v856, %v863
    %v881 = vmax.f32 %v857, %v867
    %v882 = vmax.f32 %v858, %v871
    %v883 = vmax.f32 %v859, %v875
    %v884 = vmax.f32 %v880, %v243
    %v885 = vmax.f32 %v881, %v244
    %v886 = vmax.f32 %v882, %v245
    %v887 = vmax.f32 %v883, %v246
    %v888 = vmax.f32 %v884, %v281
    %v889 = vmax.f32 %v885, %v282
    %v890 = vmax.f32 %v886, %v283
    %v891 = vmax.f32 %v887, %v284
    %v892 = vmax.f32 %v888, %v319
    %v893 = vmax.f32 %v889, %v320
    %v894 = vmax.f32 %v890, %v321
    %v895 = vmax.f32 %v891, %v322
    %v896 = vmax.f32 %v892, %v357
    %v897 = vmax.f32 %v893, %v358
    %v898 = vmax.f32 %v894, %v359
    %v899 = vmax.f32 %v895, %v360
    %v901 = vlaneseq
    %v902 = vshrl.u32 %v901, 7
    %v903 = vsub.s32 7, %v902
    %v904 = vrot.slane %v847, %v903
    %905 = vrot.lane.b32.xlu0 %v904, 17
    %v906 = vpop.permute.xlu0 %905
    %v909 = vlaneseq
    %v910 = vshrl.u32 %v909, 7
    %v911 = vsub.s32 3, %v910
    %v912 = vrot.slane %v846, %v911
    %v913 = vlaneseq
    %v914 = vshrl.u32 %v913, 7
    %v915 = vsub.s32 7, %v914
    %v916 = vrot.slane %v846, %v915
    %v917 = vlaneseq
    %v918 = vshrl.u32 %v917, 7
    %v919 = vsub.s32 3, %v918
    %v920 = vrot.slane %v847, %v919
    %921 = vrot.lane.b32.xlu0 %v912, 17
    %v922 = vpop.permute.xlu0 %921
    %923 = vrot.lane.b32.xlu0 %v916, 17
    %v924 = vpop.permute.xlu0 %923
    %925 = vrot.lane.b32.xlu0 %v920, 17
    %v926 = vpop.permute.xlu0 %925
    %v927 = vsel %vm66, %v922, %v924
    %v928 = vsel %vm66, %v924, %v926
    %v929 = vsel %vm66, %v926, %v906
    %v934 = vsel %vm66, %v906, %v922
    %v939 = vrot.slane %v23, 5
    %v940 = vrot.slane %v24, 5
    %v941 = vrot.slane %v25, 5
    %v942 = vrot.slane %v26, 5
    %v947 = vmul.f32 %v934, %v939
    %v948 = vmul.f32 %v927, %v940
    %v949 = vmul.f32 %v928, %v941
    %v950 = vmul.f32 %v929, %v942
    %951 = vrot.lane.b32.xlu0 %v904, 1
    %v952 = vpop.permute.xlu0 %951
    %954 = vrot.lane.b32.xlu0 %v912, 1
    %v955 = vpop.permute.xlu0 %954
    %956 = vrot.lane.b32.xlu0 %v916, 1
    %v957 = vpop.permute.xlu0 %956
    %958 = vrot.lane.b32.xlu0 %v920, 1
    %v959 = vpop.permute.xlu0 %958
    %v960 = vsel %vm104, %v955, %v957
    %v961 = vsel %vm104, %v957, %v959
    %v962 = vsel %vm104, %v959, %v952
    %v967 = vsel %vm104, %v952, %v955
    %v968 = vrot.slane %v23, 6
    %v969 = vrot.slane %v24, 6
    %v970 = vrot.slane %v25, 6
    %v971 = vrot.slane %v26, 6
    %v976 = vmul.f32 %v967, %v968
    %v977 = vmul.f32 %v960, %v969
    %v978 = vmul.f32 %v961, %v970
    %v979 = vmul.f32 %v962, %v971
    %v980 = vmax.f32 %v947, %v976
    %v981 = vmax.f32 %v948, %v977
    %v982 = vmax.f32 %v949, %v978
    %v983 = vmax.f32 %v950, %v979
    %984 = vrot.lane.b32.xlu0 %v912, 113
    %v985 = vpop.permute.xlu0 %984
    %986 = vrot.lane.b32.xlu0 %v916, 113
    %v987 = vpop.permute.xlu0 %986
    %988 = vrot.lane.b32.xlu0 %v920, 113
    %v989 = vpop.permute.xlu0 %988
    %990 = vrot.lane.b32.xlu0 %v904, 113
    %v991 = vpop.permute.xlu0 %990
    %v992 = vsel %vm141, %v985, %v987
    %v993 = vsel %vm141, %v987, %v989
    %v994 = vsel %vm141, %v989, %v991
    %v1000 = vsel %vm141, %v991, %v985
    %v1001 = vrot.slane %v23, 7
    %v1002 = vrot.slane %v24, 7
    %v1003 = vrot.slane %v25, 7
    %v1004 = vrot.slane %v26, 7
    %v1009 = vmul.f32 %v992, %v1001
    %v1010 = vmul.f32 %v993, %v1002
    %v1011 = vmul.f32 %v994, %v1003
    %v1012 = vmul.f32 %v1000, %v1004
    %v1013 = vmax.f32 %v980, %v1009
    %v1014 = vmax.f32 %v981, %v1010
    %v1015 = vmax.f32 %v982, %v1011
    %v1016 = vmax.f32 %v983, %v1012
    %1017 = vrot.lane.b32.xlu0 %v904, 16
    %v1018 = vpop.permute.xlu0 %1017
    %1020 = vrot.lane.b32.xlu0 %v912, 16
    %v1021 = vpop.permute.xlu0 %1020
    %1022 = vrot.lane.b32.xlu0 %v916, 16
    %v1023 = vpop.permute.xlu0 %1022
    %1024 = vrot.lane.b32.xlu0 %v920, 16
    %v1025 = vpop.permute.xlu0 %1024
    %v1026 = vsel %vm180, %v1021, %v1023
    %v1027 = vsel %vm180, %v1023, %v1025
    %v1028 = vsel %vm180, %v1025, %v1018
    %v1033 = vsel %vm180, %v1018, %v1021
    %v1034 = vmul.f32 %v1033, %v23
    %v1035 = vmul.f32 %v1026, %v24
    %v1036 = vmul.f32 %v1027, %v25
    %v1037 = vmul.f32 %v1028, %v26
    %v1038 = vmax.f32 %v1013, %v1034
    %v1039 = vmax.f32 %v1014, %v1035
    %v1040 = vmax.f32 %v1015, %v1036
    %v1041 = vmax.f32 %v1016, %v1037
    %v1046 = vmax.f32 %v1038, %v912
    %v1047 = vmax.f32 %v1039, %v916
    %v1048 = vmax.f32 %v1040, %v920
    %v1049 = vmax.f32 %v1041, %v904
    %1050 = vrot.lane.b32.xlu0 %v912, 112
    %v1051 = vpop.permute.xlu0 %1050
    %1052 = vrot.lane.b32.xlu0 %v916, 112
    %v1053 = vpop.permute.xlu0 %1052
    %1054 = vrot.lane.b32.xlu0 %v920, 112
    %v1055 = vpop.permute.xlu0 %1054
    %1056 = vrot.lane.b32.xlu0 %v904, 112
    %v1057 = vpop.permute.xlu0 %1056
    %v1058 = vsel %vm217, %v1051, %v1053
    %v1059 = vsel %vm217, %v1053, %v1055
    %v1060 = vsel %vm217, %v1055, %v1057
    %v1066 = vsel %vm217, %v1057, %v1051
    %v1067 = vrot.slane %v23, 2
    %v1068 = vrot.slane %v24, 2
    %v1069 = vrot.slane %v25, 2
    %v1070 = vrot.slane %v26, 2
    %v1075 = vmul.f32 %v1058, %v1067
    %v1076 = vmul.f32 %v1059, %v1068
    %v1077 = vmul.f32 %v1060, %v1069
    %v1078 = vmul.f32 %v1066, %v1070
    %v1079 = vmax.f32 %v1046, %v1075
    %v1080 = vmax.f32 %v1047, %v1076
    %v1081 = vmax.f32 %v1048, %v1077
    %v1082 = vmax.f32 %v1049, %v1078
    %1083 = vrot.lane.b32.xlu0 %v904, 15
    %v1084 = vpop.permute.xlu0 %1083
    %1086 = vrot.lane.b32.xlu0 %v912, 15
    %v1087 = vpop.permute.xlu0 %1086
    %1088 = vrot.lane.b32.xlu0 %v916, 15
    %v1089 = vpop.permute.xlu0 %1088
    %1090 = vrot.lane.b32.xlu0 %v920, 15
    %v1091 = vpop.permute.xlu0 %1090
    %v1092 = vsel %vm256, %v1087, %v1089
    %v1093 = vsel %vm256, %v1089, %v1091
    %v1094 = vsel %vm256, %v1091, %v1084
    %v1099 = vsel %vm256, %v1084, %v1087
    %v1100 = vrot.slane %v23, 3
    %v1101 = vrot.slane %v24, 3
    %v1102 = vrot.slane %v25, 3
    %v1103 = vrot.slane %v26, 3
    %v1108 = vmul.f32 %v1099, %v1100
    %v1109 = vmul.f32 %v1092, %v1101
    %v1110 = vmul.f32 %v1093, %v1102
    %v1111 = vmul.f32 %v1094, %v1103
    %v1112 = vmax.f32 %v1079, %v1108
    %v1113 = vmax.f32 %v1080, %v1109
    %v1114 = vmax.f32 %v1081, %v1110
    %v1115 = vmax.f32 %v1082, %v1111
    %1116 = vrot.lane.b32.xlu0 %v912, 127
    %v1117 = vpop.permute.xlu0 %1116
    %1118 = vrot.lane.b32.xlu0 %v916, 127
    %v1119 = vpop.permute.xlu0 %1118
    %1120 = vrot.lane.b32.xlu0 %v920, 127
    %v1121 = vpop.permute.xlu0 %1120
    %1122 = vrot.lane.b32.xlu0 %v904, 127
    %v1123 = vpop.permute.xlu0 %1122
    %v1124 = vsel %vm293, %v1117, %v1119
    %v1125 = vsel %vm293, %v1119, %v1121
    %v1126 = vsel %vm293, %v1121, %v1123
    %v1132 = vsel %vm293, %v1123, %v1117
    %v1133 = vrot.slane %v23, 4
    %v1134 = vrot.slane %v24, 4
    %v1135 = vrot.slane %v25, 4
    %v1136 = vrot.slane %v26, 4
    %v1141 = vmul.f32 %v1124, %v1133
    %v1142 = vmul.f32 %v1125, %v1134
    %v1143 = vmul.f32 %v1126, %v1135
    %v1144 = vmul.f32 %v1132, %v1136
    %v1145 = vmax.f32 %v1112, %v1141
    %v1146 = vmax.f32 %v1113, %v1142
    %v1147 = vmax.f32 %v1114, %v1143
    %v1148 = vmax.f32 %v1115, %v1144
    %1149 = vrot.lane.b32.xlu0 %v912, 111
    %v1150 = vpop.permute.xlu0 %1149
    %1151 = vrot.lane.b32.xlu0 %v916, 111
    %v1152 = vpop.permute.xlu0 %1151
    %1153 = vrot.lane.b32.xlu0 %v920, 111
    %v1154 = vpop.permute.xlu0 %1153
    %1155 = vrot.lane.b32.xlu0 %v904, 111
    %v1156 = vpop.permute.xlu0 %1155
    %v1157 = vsel %vm331, %v1150, %v1152
    %v1158 = vsel %vm331, %v1152, %v1154
    %v1159 = vsel %vm331, %v1154, %v1156
    %v1165 = vsel %vm331, %v1156, %v1150
    %v1170 = vrot.slane %v27, 5
    %v1171 = vrot.slane %v28, 5
    %v1172 = vrot.slane %v29, 5
    %v1173 = vrot.slane %v30, 5
    %v1178 = vmul.f32 %v1157, %v1170
    %v1179 = vmul.f32 %v1158, %v1171
    %v1180 = vmul.f32 %v1159, %v1172
    %v1181 = vmul.f32 %v1165, %v1173
    %v1182 = vmax.f32 %v1145, %v1178
    %v1183 = vmax.f32 %v1146, %v1179
    %v1184 = vmax.f32 %v1147, %v1180
    %v1185 = vmax.f32 %v1148, %v1181
    %vm1186 = vcmp.gt.f32.partialorder %v896, 0.1
    %vm1187 = vcmp.gt.f32.partialorder %v897, 0.1
    %vm1188 = vcmp.gt.f32.partialorder %v898, 0.1
    %vm1189 = vcmp.gt.f32.partialorder %v899, 0.1
    %vm1190 = vcmp.gt.f32.partialorder %v1182, 0.1
    %vm1191 = vcmp.gt.f32.partialorder %v1183, 0.1
    %vm1192 = vcmp.gt.f32.partialorder %v1184, 0.1
    %vm1193 = vcmp.gt.f32.partialorder %v1185, 0.1
    %vm1194 = vmand %vm1186, %vm1190
    %vm1195 = vmand %vm1187, %vm1191
    %vm1196 = vmand %vm1188, %vm1192
    %vm1197 = vmand %vm1189, %vm1193
    %v1198 = vsel %vm1194, 1, 0
    %v1199 = vsel %vm1195, 1, 0
    %v1200 = vsel %vm1196, 1, 0
    %v1201 = vsel %vm1197, 1, 0
    %v1202 = vcvt.s32.f32 %v1198
    %v1203 = vcvt.s32.f32 %v1199
    %v1204 = vcvt.s32.f32 %v1200
    %v1205 = vcvt.s32.f32 %v1201
    %v1206 = vlaneseq
    %v1207 = vshrl.u32 %v1206, 7
    %v1208 = vsub.s32 3, %v1207
    %v1209 = vrot.slane %v1202, %v1208
    %v1210 = vlaneseq
    %v1211 = vshrl.u32 %v1210, 7
    %v1212 = vsub.s32 3, %v1211
    %v1213 = vrot.slane %v1203, %v1212
    %v1214 = vlaneseq
    %v1215 = vshrl.u32 %v1214, 7
    %v1216 = vsub.s32 3, %v1215
    %v1217 = vrot.slane %v1204, %v1216
    %v1218 = vlaneseq
    %v1219 = vshrl.u32 %v1218, 7
    %v1220 = vsub.s32 3, %v1219
    %v1221 = vrot.slane %v1205, %v1220
    %v1226 = vcombine.low %v1209, %v1213
    %v1227 = vcombine.low %v1217, %v1221
    %v1230 = vmul.f32 %v846, %v1226
    %v1231 = vmul.f32 %v847, %v1227
  $region30: #{ca_forward.1} parent=0 // loop_footer
    %s47 = sadd.s32 1, %s43
  $region31: #{ca_forward.1} parent=0 // loop_footer_branch
    %42 = sbr.rel target = $region27
  $region32: #{ca_forward.1} parent=0 // loop_exit
    _
  %1232 = vst [vmem:[%s6] sm:$0xff] %v48
  %1233 = vst [vmem:[%s6 + $0x8] sm:$0xff] %v49
  // Predicated region
  $region33: #{ca_forward.1} parent=0 // pred_check
    _
  $region34: #{ca_forward.1} parent=0 // pred_check_branch
    %1235 = sbr.rel (0) target = $region36
  $region35: #{ca_forward.1} parent=0 // pred_region
    _
  $region36: #{ca_forward.1} parent=0 // pred_fallthru
    _
  // Predicated region
  $region37: #{ca_forward.1} parent=0 // pred_check
    _
  $region38: #{ca_forward.1} parent=0 // pred_check_branch
    %1237 = sbr.rel (0) target = $region40
  $region39: #{ca_forward.1} parent=0 // pred_region
    _
  $region40: #{ca_forward.1} parent=0 // pred_fallthru
    _

</llo_original>
